<compile_context>
chip_gen: v7x
topology: tpu7x:2x2x1
jax: 0.10.0
libtpu: 0.0.40
codegen_flags: <defaults>
</compile_context>

<pallas_src>
import functools

import jax
import jax.numpy as jnp
from jax.experimental import pallas as pl
from jax.experimental.pallas import tpu as pltpu


def _round_up(x, m):
    return ((x + m - 1) // m) * m


def _semantic_attention_kernel(z_ref, w1_ref, b1_ref, w2_ref, out_ref, beta_ref,
                               *, P, D, H):
    # z_ref   : (tn, P*D)              node tile, lane-dense
    # w1_ref  : (P*D, P*H)             block-diagonal stacked Linear(D->H) weight
    # b1_ref  : (1, P*H)               tiled bias
    # w2_ref  : (1, P*H)               tiled Linear(H->1) weight (as a row)
    # out_ref : (tn, D)                weighted sum over paths
    # beta_ref: (tn, P)                softmax attention weights (2-D, lane-dense-ish)
    z2d = z_ref[...].astype(jnp.float32)                           # (tn, P*D)

    # ---- Linear(D->H) per path as ONE lane-dense MXU matmul, + bias + tanh ----
    h = jnp.tanh(
        jnp.dot(z2d, w1_ref[...].astype(jnp.float32),
                preferred_element_type=jnp.float32)
        + b1_ref[...].astype(jnp.float32))                         # (tn, P*H)

    # ---- Linear(H->1, no bias): VPU multiply + per-path lane reduction ----
    hw = h * w2_ref[...].astype(jnp.float32)                       # (tn, P*H)
    s = jnp.concatenate(
        [jnp.sum(hw[:, p * H:(p + 1) * H], axis=-1, keepdims=True)
         for p in range(P)],
        axis=-1)                                                   # (tn, P)

    # ---- softmax over the path axis (dim=1 of the original (N, P, 1)) ----
    m = jnp.max(s, axis=-1, keepdims=True)
    e = jnp.exp(s - m)
    denom = jnp.sum(e, axis=-1, keepdims=True)
    # approx=False keeps exact softmax normalization parity with torch.softmax.
    beta = e * pl.reciprocal(denom, approx=False)                  # (tn, P)
    beta_ref[...] = beta.astype(beta_ref.dtype)

    # ---- weighted sum over paths: out = sum_p beta[:, p] * z[:, p, :] ----
    out = beta[:, 0:1] * z2d[:, 0:D]
    for p in range(1, P):
        out = out + beta[:, p:p + 1] * z2d[:, p * D:(p + 1) * D]
    out_ref[...] = out.astype(out_ref.dtype)                       # (tn, D)


def semantic_attention(z, w1, b1, w2, *, tn=1024, interpret=False):
    """HAN semantic attention.

    z : (N, P, D)  float32 or bfloat16 (bf16 halves z DMA traffic; compute is f32).
    w1: (D, H)  Linear(in_size, hidden_size).weight^T
    b1: (H,) / (1, H)  its bias
    w2: (H, 1) / (1, H) / (H,)  Linear(hidden_size, 1, bias=False).weight^T

    Returns: out (N, D) in z.dtype, beta (N, P, 1) float32 (== module.attnw).
    """
    z = jnp.asarray(z)
    N, P, D = z.shape
    H = w1.shape[1]
    b1 = jnp.asarray(b1).reshape(1, H)
    w2 = jnp.asarray(w2).reshape(1, H)

    # Stacked block-diagonal weights: the whole (P, D) inner extent becomes a
    # single lane-dense 2-D MXU operand. Size is O(P^2 * D * H) — fine for the
    # small metapath counts this module is used with.
    w1_bd = jnp.kron(jnp.eye(P, dtype=w1.dtype), w1)               # (P*D, P*H)
    b1_t = jnp.tile(b1, (1, P)).astype(jnp.float32)                # (1, P*H)
    w2_t = jnp.tile(w2, (1, P)).astype(jnp.float32)                # (1, P*H)

    # ---- node-tile selection: big tiles (mem-bound), clamped to a VMEM budget ----
    itemsize = jnp.dtype(z.dtype).itemsize
    row_bytes = (P * D) * itemsize + D * itemsize + P * 4          # z + out + beta per node
    vmem_budget = 8 * 1024 * 1024                                  # per-buffer; double-buffered
    tn = max(8, min(int(tn), vmem_budget // max(row_bytes, 1)))
    tn = _round_up(min(tn, N), 8)
    n_pad = _round_up(N, tn)

    z2 = z.reshape(N, P * D)
    if n_pad != N:
        # Ragged last tile: pad with zeros (rows compute finite garbage, sliced off).
        z2 = jnp.pad(z2, ((0, n_pad - N), (0, 0)))

    kernel = functools.partial(_semantic_attention_kernel, P=P, D=D, H=H)

    out, beta = pl.pallas_call(
        kernel,
        out_shape=(
            jax.ShapeDtypeStruct((n_pad, D), z.dtype),
            jax.ShapeDtypeStruct((n_pad, P), jnp.float32),
        ),
        grid_spec=pltpu.PrefetchScalarGridSpec(
            num_scalar_prefetch=0,
            grid=(n_pad // tn,),
            in_specs=[
                pl.BlockSpec((tn, P * D), lambda i: (i, 0)),       # z tile (lane-dense)
                pl.BlockSpec((P * D, P * H), lambda i: (0, 0)),    # W1 block-diag (resident)
                pl.BlockSpec((1, P * H), lambda i: (0, 0)),        # b1 tiled
                pl.BlockSpec((1, P * H), lambda i: (0, 0)),        # w2 tiled
            ],
            out_specs=[
                pl.BlockSpec((tn, D), lambda i: (i, 0)),           # out tile
                pl.BlockSpec((tn, P), lambda i: (i, 0)),           # beta tile (2-D)
            ],
        ),
        compiler_params=pltpu.CompilerParams(
            dimension_semantics=("parallel",)),                    # shards tiles across TCs (v7x)
        interpret=interpret,
    )(z2, w1_bd, b1_t, w2_t)

    out = out[:N]
    beta = beta[:N].reshape(N, P, 1)
    return out, beta


def semantic_attention_ref(z, w1, b1, w2):
    """Pure-JAX reference matching the PyTorch module."""
    b1 = jnp.asarray(b1).reshape(1, 1, -1)
    w2 = jnp.asarray(w2).reshape(-1, 1)
    h = jnp.tanh(
        jnp.einsum("npd,dh->nph", z, w1, precision=jax.lax.Precision.HIGHEST) + b1)
    s = jnp.einsum("nph,ho->npo", h, w2, precision=jax.lax.Precision.HIGHEST)
    beta = jax.nn.softmax(s, axis=1)
    return (beta * z).sum(axis=1), beta


if __name__ == "__main__":
    # Small shapes consistent with the module's forward: z:(num_nodes, n_path, dim).
    N, P, D, H = 64, 4, 32, 16

    key = jax.random.PRNGKey(0)
    kz, kw1, kb1, kw2 = jax.random.split(key, 4)

    z = jax.random.normal(kz, (N, P, D), dtype=jnp.float32)
    # Synthetic parameters: Linear(D, H, bias=True), Linear(H, 1, bias=False)
    w1 = jax.random.normal(kw1, (D, H), dtype=jnp.float32) * 0.1
    b1 = jax.random.normal(kb1, (1, H), dtype=jnp.float32) * 0.1
    w2 = jax.random.normal(kw2, (H, 1), dtype=jnp.float32) * 0.1

    out_ref, beta_ref = semantic_attention_ref(z, w1, b1, w2)

    # ---- f32 path: exact parity with the module ----
    out, beta = semantic_attention(z, w1, b1, w2)
    jax.block_until_ready((out, beta))
    assert out.shape == (N, D) and beta.shape == (N, P, 1)
    assert jnp.allclose(out, out_ref, atol=1e-4, rtol=1e-4)
    assert jnp.allclose(beta, beta_ref, atol=1e-4, rtol=1e-4)

    # ---- bf16 z at the boundary (halves DMA traffic); compute stays f32 ----
    out_bf, beta_bf = semantic_attention(z.astype(jnp.bfloat16), w1, b1, w2)
    jax.block_until_ready((out_bf, beta_bf))
    assert jnp.allclose(out_bf.astype(jnp.float32), out_ref, atol=5e-2, rtol=5e-2)

    # ---- ragged N (not a multiple of the node tile) exercises the padding path ----
    out_r, beta_r = semantic_attention(z[:50], w1, b1, w2, tn=16)
    jax.block_until_ready((out_r, beta_r))
    assert jnp.allclose(out_r, out_ref[:50], atol=1e-4, rtol=1e-4)
    assert jnp.allclose(beta_r, beta_ref[:50], atol=1e-4, rtol=1e-4)

    print("KERNEL_OK")
</pallas_src>

<mosaic_0001>
module attributes {stable_mosaic.version = 11 : i64} {
  func.func @_semantic_attention_kernel(%arg0: i32, %arg1: memref<64x128xf32, #tpu.memory_space<vmem>>, %arg2: memref<128x64xf32, #tpu.memory_space<vmem>>, %arg3: memref<1x64xf32, #tpu.memory_space<vmem>>, %arg4: memref<1x64xf32, #tpu.memory_space<vmem>>, %arg5: memref<64x32xf32, #tpu.memory_space<vmem>>, %arg6: memref<64x4xf32, #tpu.memory_space<vmem>>) attributes {dimension_semantics = [#tpu.dimension_semantics<parallel>], iteration_bounds = array<i64: 1>, scalar_prefetch = 0 : i64, scratch_operands = 0 : i64, tpu.core_type = #tpu.core_type<tc>, window_params = [{transform_indices = @transform_0, window_bounds = array<i64: 64, 128>}, {pipeline_mode = #tpu.pipeline_mode<synchronous>, transform_indices = @transform_1, window_bounds = array<i64: 128, 64>}, {pipeline_mode = #tpu.pipeline_mode<synchronous>, transform_indices = @transform_2, window_bounds = array<i64: 1, 64>}, {pipeline_mode = #tpu.pipeline_mode<synchronous>, transform_indices = @transform_3, window_bounds = array<i64: 1, 64>}, {transform_indices = @transform_4, window_bounds = array<i64: 64, 32>}, {transform_indices = @transform_5, window_bounds = array<i64: 64, 4>}]} {
    %c0 = arith.constant 0 : index
    %c0_0 = arith.constant 0 : index
    %0 = vector.load %arg1[%c0, %c0_0] : memref<64x128xf32, #tpu.memory_space<vmem>>, vector<64x128xf32>
    %c0_1 = arith.constant 0 : index
    %c0_2 = arith.constant 0 : index
    %1 = vector.load %arg2[%c0_1, %c0_2] : memref<128x64xf32, #tpu.memory_space<vmem>>, vector<128x64xf32>
    %cst = arith.constant dense<0.000000e+00> : vector<64x64xf32>
    %2 = tpu.matmul %0, %1, %cst {dimension_numbers = #tpu.dot_dimension_numbers<[1], [0], [0], [1], [0, 0, 1, 1], [], []>} : vector<64x128xf32>, vector<128x64xf32>, vector<64x64xf32> -> vector<64x64xf32>
    %c0_3 = arith.constant 0 : index
    %c0_4 = arith.constant 0 : index
    %3 = vector.load %arg3[%c0_3, %c0_4] : memref<1x64xf32, #tpu.memory_space<vmem>>, vector<1x64xf32>
    %4 = vector.broadcast %3 : vector<1x64xf32> to vector<64x64xf32>
    %5 = arith.addf %2, %4 : vector<64x64xf32>
    %6 = math.tanh %5 : vector<64x64xf32>
    %c0_5 = arith.constant 0 : index
    %c0_6 = arith.constant 0 : index
    %7 = vector.load %arg4[%c0_5, %c0_6] : memref<1x64xf32, #tpu.memory_space<vmem>>, vector<1x64xf32>
    %8 = vector.broadcast %7 : vector<1x64xf32> to vector<64x64xf32>
    %9 = arith.mulf %6, %8 : vector<64x64xf32>
    %10 = vector.extract_strided_slice %9 {offsets = [0, 0], sizes = [64, 16], strides = [1, 1]} : vector<64x64xf32> to vector<64x16xf32>
    %cst_7 = arith.constant dense<0.000000e+00> : vector<64xf32>
    %11 = vector.multi_reduction <add>, %10, %cst_7 [1] : vector<64x16xf32> to vector<64xf32>
    %12 = vector.shape_cast %11 : vector<64xf32> to vector<64x1xf32>
    %13 = vector.extract_strided_slice %9 {offsets = [0, 16], sizes = [64, 16], strides = [1, 1]} : vector<64x64xf32> to vector<64x16xf32>
    %cst_8 = arith.constant dense<0.000000e+00> : vector<64xf32>
    %14 = vector.multi_reduction <add>, %13, %cst_8 [1] : vector<64x16xf32> to vector<64xf32>
    %15 = vector.shape_cast %14 : vector<64xf32> to vector<64x1xf32>
    %16 = vector.extract_strided_slice %9 {offsets = [0, 32], sizes = [64, 16], strides = [1, 1]} : vector<64x64xf32> to vector<64x16xf32>
    %cst_9 = arith.constant dense<0.000000e+00> : vector<64xf32>
    %17 = vector.multi_reduction <add>, %16, %cst_9 [1] : vector<64x16xf32> to vector<64xf32>
    %18 = vector.shape_cast %17 : vector<64xf32> to vector<64x1xf32>
    %19 = vector.extract_strided_slice %9 {offsets = [0, 48], sizes = [64, 16], strides = [1, 1]} : vector<64x64xf32> to vector<64x16xf32>
    %cst_10 = arith.constant dense<0.000000e+00> : vector<64xf32>
    %20 = vector.multi_reduction <add>, %19, %cst_10 [1] : vector<64x16xf32> to vector<64xf32>
    %21 = vector.shape_cast %20 : vector<64xf32> to vector<64x1xf32>
    %22 = tpu.concatenate %12, %15, %18, %21 in 1 : vector<64x1xf32>, vector<64x1xf32>, vector<64x1xf32>, vector<64x1xf32> -> vector<64x4xf32>
    %cst_11 = arith.constant dense<0xFF800000> : vector<64xf32>
    %23 = vector.multi_reduction <maximumf>, %22, %cst_11 [1] : vector<64x4xf32> to vector<64xf32>
    %24 = vector.shape_cast %23 : vector<64xf32> to vector<64x1xf32>
    %25 = vector.broadcast %24 : vector<64x1xf32> to vector<64x4xf32>
    %26 = arith.subf %22, %25 : vector<64x4xf32>
    %27 = math.exp %26 : vector<64x4xf32>
    %cst_12 = arith.constant dense<0.000000e+00> : vector<64xf32>
    %28 = vector.multi_reduction <add>, %27, %cst_12 [1] : vector<64x4xf32> to vector<64xf32>
    %29 = vector.shape_cast %28 : vector<64xf32> to vector<64x1xf32>
    %30 = tpu.reciprocal %29 : vector<64x1xf32> -> vector<64x1xf32>
    %31 = vector.broadcast %30 : vector<64x1xf32> to vector<64x4xf32>
    %32 = arith.mulf %27, %31 : vector<64x4xf32>
    %c0_13 = arith.constant 0 : index
    %c0_14 = arith.constant 0 : index
    %33 = vector.load %arg6[%c0_13, %c0_14] : memref<64x4xf32, #tpu.memory_space<vmem>>, vector<64x4xf32>
    tpu.vector_store %arg6[%c0_13, %c0_14], %32 {strides = array<i32>} : memref<64x4xf32, #tpu.memory_space<vmem>>, vector<64x4xf32>,
    %34 = vector.extract_strided_slice %32 {offsets = [0, 0], sizes = [64, 1], strides = [1, 1]} : vector<64x4xf32> to vector<64x1xf32>
    %35 = vector.extract_strided_slice %0 {offsets = [0, 0], sizes = [64, 32], strides = [1, 1]} : vector<64x128xf32> to vector<64x32xf32>
    %36 = vector.broadcast %34 : vector<64x1xf32> to vector<64x32xf32>
    %37 = arith.mulf %36, %35 : vector<64x32xf32>
    %38 = vector.extract_strided_slice %32 {offsets = [0, 1], sizes = [64, 1], strides = [1, 1]} : vector<64x4xf32> to vector<64x1xf32>
    %39 = vector.extract_strided_slice %0 {offsets = [0, 32], sizes = [64, 32], strides = [1, 1]} : vector<64x128xf32> to vector<64x32xf32>
    %40 = vector.broadcast %38 : vector<64x1xf32> to vector<64x32xf32>
    %41 = arith.mulf %40, %39 : vector<64x32xf32>
    %42 = arith.addf %37, %41 : vector<64x32xf32>
    %43 = vector.extract_strided_slice %32 {offsets = [0, 2], sizes = [64, 1], strides = [1, 1]} : vector<64x4xf32> to vector<64x1xf32>
    %44 = vector.extract_strided_slice %0 {offsets = [0, 64], sizes = [64, 32], strides = [1, 1]} : vector<64x128xf32> to vector<64x32xf32>
    %45 = vector.broadcast %43 : vector<64x1xf32> to vector<64x32xf32>
    %46 = arith.mulf %45, %44 : vector<64x32xf32>
    %47 = arith.addf %42, %46 : vector<64x32xf32>
    %48 = vector.extract_strided_slice %32 {offsets = [0, 3], sizes = [64, 1], strides = [1, 1]} : vector<64x4xf32> to vector<64x1xf32>
    %49 = vector.extract_strided_slice %0 {offsets = [0, 96], sizes = [64, 32], strides = [1, 1]} : vector<64x128xf32> to vector<64x32xf32>
    %50 = vector.broadcast %48 : vector<64x1xf32> to vector<64x32xf32>
    %51 = arith.mulf %50, %49 : vector<64x32xf32>
    %52 = arith.addf %47, %51 : vector<64x32xf32>
    %c0_15 = arith.constant 0 : index
    %c0_16 = arith.constant 0 : index
    %53 = vector.load %arg5[%c0_15, %c0_16] : memref<64x32xf32, #tpu.memory_space<vmem>>, vector<64x32xf32>
    tpu.vector_store %arg5[%c0_15, %c0_16], %52 {strides = array<i32>} : memref<64x32xf32, #tpu.memory_space<vmem>>, vector<64x32xf32>,
    return
  }
  func.func @transform_0(%arg0: i32) -> (i32, i32) {
    %c0_i32 = arith.constant 0 : i32
    %c0_i32_0 = arith.constant 0 : i32
    return %arg0, %c0_i32 : i32, i32
  }
  func.func @transform_1(%arg0: i32) -> (i32, i32) {
    %c0_i32 = arith.constant 0 : i32
    %c0_i32_0 = arith.constant 0 : i32
    %c0_i32_1 = arith.constant 0 : i32
    return %c0_i32, %c0_i32_0 : i32, i32
  }
  func.func @transform_2(%arg0: i32) -> (i32, i32) {
    %c0_i32 = arith.constant 0 : i32
    %c0_i32_0 = arith.constant 0 : i32
    %c0_i32_1 = arith.constant 0 : i32
    return %c0_i32, %c0_i32_0 : i32, i32
  }
  func.func @transform_3(%arg0: i32) -> (i32, i32) {
    %c0_i32 = arith.constant 0 : i32
    %c0_i32_0 = arith.constant 0 : i32
    %c0_i32_1 = arith.constant 0 : i32
    return %c0_i32, %c0_i32_0 : i32, i32
  }
  func.func @transform_4(%arg0: i32) -> (i32, i32) {
    %c0_i32 = arith.constant 0 : i32
    %c0_i32_0 = arith.constant 0 : i32
    return %arg0, %c0_i32 : i32, i32
  }
  func.func @transform_5(%arg0: i32) -> (i32, i32) {
    %c0_i32 = arith.constant 0 : i32
    %c0_i32_0 = arith.constant 0 : i32
    return %arg0, %c0_i32 : i32, i32
  }
}

</mosaic_0001>

<llo_original>
// kernel: tpu_custom_call.1
$region0: #{tpu_custom_call.1}
  #allocation0 [shape = 'u32[]', space=smem, size = 0x4, offset = 0x4, fixed_abs, tag = 'smem constant byte address 0x4 - core index']
  #allocation1 [shape = 'u32[144,128]{1,0:T(1,128)}', space=vmem, size = 0x12000, scoped, tag = 'internal scratch']
  %s0 = inlined_call_operand.vmem [shape: f32[64,128], index: 0, kind: input, shape index: {}]
  %s1 = inlined_call_operand.vmem [shape: f32[128,64], index: 1, kind: input, shape index: {}]
  %s2 = inlined_call_operand.vmem [shape: f32[1,64], index: 2, kind: input, shape index: {}]
  %s3 = inlined_call_operand.vmem [shape: f32[1,64], index: 3, kind: input, shape index: {}]
  %s4 = inlined_call_operand.vmem [shape: f32[64,32], index: 4, kind: output, shape index: {0}]
  %s5 = inlined_call_operand.vmem [shape: f32[64,4], index: 5, kind: output, shape index: {1}]
  %6 = xla_tuple %s4, %s5
  %s7 = sld [smem:[#allocation0]]
  $region34: #{tpu_custom_call.1} parent=0
    _
  %s9 = ssub.s32 1, %s7
  %s10 = scalar_select 0, %s9, %s7
  // Predicated region
  $region2: #{tpu_custom_call.1} parent=0 // pred_check
    _
  $region3: #{tpu_custom_call.1} parent=0 // pred_check_branch
    %12 = sbr.rel (0) target = $region5
  $region4: #{tpu_custom_call.1} parent=0 // pred_region
    _
  $region5: #{tpu_custom_call.1} parent=0 // pred_fallthru
    _
  // Predicated region
  $region6: #{tpu_custom_call.1} parent=0 // pred_check
    _
  $region7: #{tpu_custom_call.1} parent=0 // pred_check_branch
    %14 = sbr.rel (0) target = $region9
  $region8: #{tpu_custom_call.1} parent=0 // pred_region
    _
  $region9: #{tpu_custom_call.1} parent=0 // pred_fallthru
    _
  // Predicated region
  $region10: #{tpu_custom_call.1} parent=0 // pred_check
    _
  $region11: #{tpu_custom_call.1} parent=0 // pred_check_branch
    %16 = sbr.rel (0) target = $region13
  $region12: #{tpu_custom_call.1} parent=0 // pred_region
    _
  $region13: #{tpu_custom_call.1} parent=0 // pred_fallthru
    _
  // Predicated region
  $region14: #{tpu_custom_call.1} parent=0 // pred_check
    _
  $region15: #{tpu_custom_call.1} parent=0 // pred_check_branch
    %18 = sbr.rel (0) target = $region17
  $region16: #{tpu_custom_call.1} parent=0 // pred_region
    _
  $region17: #{tpu_custom_call.1} parent=0 // pred_fallthru
    _
  %v19 = vld [vmem:[%s0] sm:$0xff]
  %v20 = vld [vmem:[%s0 + $0x8] sm:$0xff]
  %v21 = vld [vmem:[%s0 + $0x10] sm:$0xff]
  %v22 = vld [vmem:[%s0 + $0x18] sm:$0xff]
  %v23 = vld [vmem:[%s0 + $0x20] sm:$0xff]
  %v24 = vld [vmem:[%s0 + $0x28] sm:$0xff]
  %v25 = vld [vmem:[%s0 + $0x30] sm:$0xff]
  %v26 = vld [vmem:[%s0 + $0x38] sm:$0xff]
  %v27 = vld [vmem:[%s1] sm:$0xff]
  %v28 = vld [vmem:[%s1 + $0x8] sm:$0xff]
  %v29 = vld [vmem:[%s1 + $0x10] sm:$0xff]
  %v30 = vld [vmem:[%s1 + $0x18] sm:$0xff]
  %v31 = vld [vmem:[%s1 + $0x20] sm:$0xff]
  %v32 = vld [vmem:[%s1 + $0x28] sm:$0xff]
  %v33 = vld [vmem:[%s1 + $0x30] sm:$0xff]
  %v34 = vld [vmem:[%s1 + $0x38] sm:$0xff]
  %v35 = vld [vmem:[%s1 + $0x40] sm:$0xff]
  %v36 = vld [vmem:[%s1 + $0x48] sm:$0xff]
  %v37 = vld [vmem:[%s1 + $0x50] sm:$0xff]
  %v38 = vld [vmem:[%s1 + $0x58] sm:$0xff]
  %v39 = vld [vmem:[%s1 + $0x60] sm:$0xff]
  %v40 = vld [vmem:[%s1 + $0x68] sm:$0xff]
  %v41 = vld [vmem:[%s1 + $0x70] sm:$0xff]
  %v42 = vld [vmem:[%s1 + $0x78] sm:$0xff]
  %v43 = vld [vmem:[%s2] sm:$0x1]
  %v45 = vlaneseq
  %v46 = vshrl.u32 %v45, 7
  %v47 = vsub.s32 0, %v46
  %v48 = vrot.slane %v43, %v47
  %50 = vmatprep.subr.mxu0 0.0
  %51 = vmatpush1.msra.mxu0 %v27
  %52 = vmatprep.subr.mxu0 0.0
  %53 = vmatpush1.msra.mxu0 %v28
  %54 = vmatprep.subr.mxu0 0.0
  %55 = vmatpush1.msra.mxu0 %v29
  %56 = vmatprep.subr.mxu0 0.0
  %57 = vmatpush1.msra.mxu0 %v30
  %58 = vmatprep.subr.mxu0 0.0
  %59 = vmatpush1.msra.mxu0 %v31
  %60 = vmatprep.subr.mxu0 0.0
  %61 = vmatpush1.msra.mxu0 %v32
  %62 = vmatprep.subr.mxu0 0.0
  %63 = vmatpush1.msra.mxu0 %v33
  %64 = vmatprep.subr.mxu0 0.0
  %65 = vmatpush1.msra.mxu0 %v34
  %66 = vmatprep.subr.mxu0 0.0
  %67 = vmatpush1.msra.mxu0 %v35
  %68 = vmatprep.subr.mxu0 0.0
  %69 = vmatpush1.msra.mxu0 %v36
  %70 = vmatprep.subr.mxu0 0.0
  %71 = vmatpush1.msra.mxu0 %v37
  %72 = vmatprep.subr.mxu0 0.0
  %73 = vmatpush1.msra.mxu0 %v38
  %74 = vmatprep.subr.mxu0 0.0
  %75 = vmatpush1.msra.mxu0 %v39
  %76 = vmatprep.subr.mxu0 0.0
  %77 = vmatpush1.msra.mxu0 %v40
  %78 = vmatprep.subr.mxu0 0.0
  %79 = vmatpush1.msra.mxu0 %v41
  %80 = vmatprep.subr.mxu0 0.0
  %81 = vmatpush1.msra.mxu0 %v42
  %82 = vmatprep.subr.mxu0 0.0
  %83 = vmatpush1.msra.mxu0 0.0
  %84 = vmatprep.subr.mxu0 0.0
  %85 = vmatpush1.msra.mxu0 0.0
  %86 = vmatprep.subr.mxu0 0.0
  %87 = vmatpush1.msra.mxu0 0.0
  %88 = vmatprep.subr.mxu0 0.0
  %89 = vmatpush1.msra.mxu0 0.0
  %90 = vmatprep.subr.mxu0 0.0
  %91 = vmatpush1.msra.mxu0 0.0
  %92 = vmatprep.subr.mxu0 0.0
  %93 = vmatpush1.msra.mxu0 0.0
  %94 = vmatprep.subr.mxu0 0.0
  %95 = vmatpush1.msra.mxu0 0.0
  %96 = vmatprep.subr.mxu0 0.0
  %97 = vmatpush1.msra.mxu0 0.0
  %98 = vmatprep.subr.mxu0 0.0
  %99 = vmatpush1.msra.mxu0 0.0
  %100 = vmatprep.subr.mxu0 0.0
  %101 = vmatpush1.msra.mxu0 0.0
  %102 = vmatprep.subr.mxu0 0.0
  %103 = vmatpush1.msra.mxu0 0.0
  %104 = vmatprep.subr.mxu0 0.0
  %105 = vmatpush1.msra.mxu0 0.0
  %106 = vmatprep.subr.mxu0 0.0
  %107 = vmatpush1.msra.mxu0 0.0
  %108 = vmatprep.subr.mxu0 0.0
  %109 = vmatpush1.msra.mxu0 0.0
  %110 = vmatprep.subr.mxu0 0.0
  %111 = vmatpush1.msra.mxu0 0.0
  %112 = vmatprep.subr.mxu0 0.0
  %113 = vmatpush1.msra.mxu0 0.0
  %114 = vmatprep.mubr.f32.mxu0 0.0
  %115 = vmatmul.mubr.f32.gmra.mrb[0].mxu0 %v19
  %v116 = vpop.f32.mrb[0].mxu0
  %v117 = vadd.f32 %v48, %v116
  %v118 = vpop.f32.mrb[0].mxu0
  %119 = vmatprep.mubr.f32.mxu0 0.0
  %120 = vmatmul.mubr.f32.gmra.mrb[0].mxu0 %v20
  %v121 = vpop.f32.mrb[0].mxu0
  %v122 = vadd.f32 %v48, %v121
  %v123 = vpop.f32.mrb[0].mxu0
  %124 = vmatprep.mubr.f32.mxu0 0.0
  %125 = vmatmul.mubr.f32.gmra.mrb[0].mxu0 %v21
  %v126 = vpop.f32.mrb[0].mxu0
  %v127 = vadd.f32 %v48, %v126
  %v128 = vpop.f32.mrb[0].mxu0
  %129 = vmatprep.mubr.f32.mxu0 0.0
  %130 = vmatmul.mubr.f32.gmra.mrb[0].mxu0 %v22
  %v131 = vpop.f32.mrb[0].mxu0
  %v132 = vadd.f32 %v48, %v131
  %v133 = vpop.f32.mrb[0].mxu0
  %134 = vmatprep.mubr.f32.mxu0 0.0
  %135 = vmatmul.mubr.f32.gmra.mrb[0].mxu0 %v23
  %v136 = vpop.f32.mrb[0].mxu0
  %v137 = vadd.f32 %v48, %v136
  %v138 = vpop.f32.mrb[0].mxu0
  %139 = vmatprep.mubr.f32.mxu0 0.0
  %140 = vmatmul.mubr.f32.gmra.mrb[0].mxu0 %v24
  %v141 = vpop.f32.mrb[0].mxu0
  %v142 = vadd.f32 %v48, %v141
  %v143 = vpop.f32.mrb[0].mxu0
  %144 = vmatprep.mubr.f32.mxu0 0.0
  %145 = vmatmul.mubr.f32.gmra.mrb[0].mxu0 %v25
  %v146 = vpop.f32.mrb[0].mxu0
  %v147 = vadd.f32 %v48, %v146
  %v148 = vpop.f32.mrb[0].mxu0
  %149 = vmatprep.mubr.f32.mxu0 0.0
  %150 = vmatmul.mubr.f32.gmra.mrb[0].mxu0 %v26
  %v151 = vpop.f32.mrb[0].mxu0
  %v152 = vadd.f32 %v48, %v151
  %v153 = vpop.f32.mrb[0].mxu0
  %154 = vdwg.mxu0
  %v155 = vtanh.pop %v117
  %v156 = vtanh.pop %v122
  %v157 = vtanh.pop %v127
  %v158 = vtanh.pop %v132
  %v159 = vtanh.pop %v137
  %v160 = vtanh.pop %v142
  %v161 = vtanh.pop %v147
  %v162 = vtanh.pop %v152
  %v163 = vld [vmem:[%s3] sm:$0x1]
  %v165 = vlaneseq
  %v166 = vshrl.u32 %v165, 7
  %v167 = vsub.s32 0, %v166
  %v168 = vrot.slane %v163, %v167
  %v170 = vmul.f32 %v155, %v168
  %v171 = vmul.f32 %v156, %v168
  %v172 = vmul.f32 %v157, %v168
  %v173 = vmul.f32 %v158, %v168
  %v174 = vmul.f32 %v159, %v168
  %v175 = vmul.f32 %v160, %v168
  %v176 = vmul.f32 %v161, %v168
  %v177 = vmul.f32 %v162, %v168
  %vm178 = vcmask 130048
  %v179 = vsel %vm178, %v170, 0.0
  %180 = vadd.xlane.f32.xlu0 %v179
  %v181 = vpop.xlane.xlu0 %180
  %v182 = vsel %vm178, %v171, 0.0
  %183 = vadd.xlane.f32.xlu0 %v182
  %v184 = vpop.xlane.xlu0 %183
  %v185 = vsel %vm178, %v172, 0.0
  %186 = vadd.xlane.f32.xlu0 %v185
  %v187 = vpop.xlane.xlu0 %186
  %v188 = vsel %vm178, %v173, 0.0
  %189 = vadd.xlane.f32.xlu0 %v188
  %v190 = vpop.xlane.xlu0 %189
  %v191 = vsel %vm178, %v174, 0.0
  %192 = vadd.xlane.f32.xlu0 %v191
  %v193 = vpop.xlane.xlu0 %192
  %v194 = vsel %vm178, %v175, 0.0
  %195 = vadd.xlane.f32.xlu0 %v194
  %v196 = vpop.xlane.xlu0 %195
  %v197 = vsel %vm178, %v176, 0.0
  %198 = vadd.xlane.f32.xlu0 %v197
  %v199 = vpop.xlane.xlu0 %198
  %v200 = vsel %vm178, %v177, 0.0
  %201 = vadd.xlane.f32.xlu0 %v200
  %v202 = vpop.xlane.xlu0 %201
  %211 = vrot.lane.b32.xlu0 %v170, 112
  %v212 = vpop.permute.xlu0 %211
  %213 = vrot.lane.b32.xlu0 %v171, 112
  %v214 = vpop.permute.xlu0 %213
  %215 = vrot.lane.b32.xlu0 %v172, 112
  %v216 = vpop.permute.xlu0 %215
  %217 = vrot.lane.b32.xlu0 %v173, 112
  %v218 = vpop.permute.xlu0 %217
  %219 = vrot.lane.b32.xlu0 %v174, 112
  %v220 = vpop.permute.xlu0 %219
  %221 = vrot.lane.b32.xlu0 %v175, 112
  %v222 = vpop.permute.xlu0 %221
  %223 = vrot.lane.b32.xlu0 %v176, 112
  %v224 = vpop.permute.xlu0 %223
  %225 = vrot.lane.b32.xlu0 %v177, 112
  %v226 = vpop.permute.xlu0 %225
  %v235 = vsel %vm178, %v212, 0.0
  %236 = vadd.xlane.f32.xlu0 %v235
  %v237 = vpop.xlane.xlu0 %236
  %v238 = vsel %vm178, %v214, 0.0
  %239 = vadd.xlane.f32.xlu0 %v238
  %v240 = vpop.xlane.xlu0 %239
  %v241 = vsel %vm178, %v216, 0.0
  %242 = vadd.xlane.f32.xlu0 %v241
  %v243 = vpop.xlane.xlu0 %242
  %v244 = vsel %vm178, %v218, 0.0
  %245 = vadd.xlane.f32.xlu0 %v244
  %v246 = vpop.xlane.xlu0 %245
  %v247 = vsel %vm178, %v220, 0.0
  %248 = vadd.xlane.f32.xlu0 %v247
  %v249 = vpop.xlane.xlu0 %248
  %v250 = vsel %vm178, %v222, 0.0
  %251 = vadd.xlane.f32.xlu0 %v250
  %v252 = vpop.xlane.xlu0 %251
  %v253 = vsel %vm178, %v224, 0.0
  %254 = vadd.xlane.f32.xlu0 %v253
  %v255 = vpop.xlane.xlu0 %254
  %v256 = vsel %vm178, %v226, 0.0
  %257 = vadd.xlane.f32.xlu0 %v256
  %v258 = vpop.xlane.xlu0 %257
  %259 = vrot.lane.b32.xlu0 %v170, 96
  %v260 = vpop.permute.xlu0 %259
  %261 = vrot.lane.b32.xlu0 %v171, 96
  %v262 = vpop.permute.xlu0 %261
  %263 = vrot.lane.b32.xlu0 %v172, 96
  %v264 = vpop.permute.xlu0 %263
  %265 = vrot.lane.b32.xlu0 %v173, 96
  %v266 = vpop.permute.xlu0 %265
  %267 = vrot.lane.b32.xlu0 %v174, 96
  %v268 = vpop.permute.xlu0 %267
  %269 = vrot.lane.b32.xlu0 %v175, 96
  %v270 = vpop.permute.xlu0 %269
  %271 = vrot.lane.b32.xlu0 %v176, 96
  %v272 = vpop.permute.xlu0 %271
  %273 = vrot.lane.b32.xlu0 %v177, 96
  %v274 = vpop.permute.xlu0 %273
  %v283 = vsel %vm178, %v260, 0.0
  %284 = vadd.xlane.f32.xlu0 %v283
  %v285 = vpop.xlane.xlu0 %284
  %v286 = vsel %vm178, %v262, 0.0
  %287 = vadd.xlane.f32.xlu0 %v286
  %v288 = vpop.xlane.xlu0 %287
  %v289 = vsel %vm178, %v264, 0.0
  %290 = vadd.xlane.f32.xlu0 %v289
  %v291 = vpop.xlane.xlu0 %290
  %v292 = vsel %vm178, %v266, 0.0
  %293 = vadd.xlane.f32.xlu0 %v292
  %v294 = vpop.xlane.xlu0 %293
  %v295 = vsel %vm178, %v268, 0.0
  %296 = vadd.xlane.f32.xlu0 %v295
  %v297 = vpop.xlane.xlu0 %296
  %v298 = vsel %vm178, %v270, 0.0
  %299 = vadd.xlane.f32.xlu0 %v298
  %v300 = vpop.xlane.xlu0 %299
  %v301 = vsel %vm178, %v272, 0.0
  %302 = vadd.xlane.f32.xlu0 %v301
  %v303 = vpop.xlane.xlu0 %302
  %v304 = vsel %vm178, %v274, 0.0
  %305 = vadd.xlane.f32.xlu0 %v304
  %v306 = vpop.xlane.xlu0 %305
  %307 = vrot.lane.b32.xlu0 %v170, 80
  %v308 = vpop.permute.xlu0 %307
  %309 = vrot.lane.b32.xlu0 %v171, 80
  %v310 = vpop.permute.xlu0 %309
  %311 = vrot.lane.b32.xlu0 %v172, 80
  %v312 = vpop.permute.xlu0 %311
  %313 = vrot.lane.b32.xlu0 %v173, 80
  %v314 = vpop.permute.xlu0 %313
  %315 = vrot.lane.b32.xlu0 %v174, 80
  %v316 = vpop.permute.xlu0 %315
  %317 = vrot.lane.b32.xlu0 %v175, 80
  %v318 = vpop.permute.xlu0 %317
  %319 = vrot.lane.b32.xlu0 %v176, 80
  %v320 = vpop.permute.xlu0 %319
  %321 = vrot.lane.b32.xlu0 %v177, 80
  %v322 = vpop.permute.xlu0 %321
  %v331 = vsel %vm178, %v308, 0.0
  %332 = vadd.xlane.f32.xlu0 %v331
  %v333 = vpop.xlane.xlu0 %332
  %v334 = vsel %vm178, %v310, 0.0
  %335 = vadd.xlane.f32.xlu0 %v334
  %v336 = vpop.xlane.xlu0 %335
  %v337 = vsel %vm178, %v312, 0.0
  %338 = vadd.xlane.f32.xlu0 %v337
  %v339 = vpop.xlane.xlu0 %338
  %v340 = vsel %vm178, %v314, 0.0
  %341 = vadd.xlane.f32.xlu0 %v340
  %v342 = vpop.xlane.xlu0 %341
  %v343 = vsel %vm178, %v316, 0.0
  %344 = vadd.xlane.f32.xlu0 %v343
  %v345 = vpop.xlane.xlu0 %344
  %v346 = vsel %vm178, %v318, 0.0
  %347 = vadd.xlane.f32.xlu0 %v346
  %v348 = vpop.xlane.xlu0 %347
  %v349 = vsel %vm178, %v320, 0.0
  %350 = vadd.xlane.f32.xlu0 %v349
  %v351 = vpop.xlane.xlu0 %350
  %v352 = vsel %vm178, %v322, 0.0
  %353 = vadd.xlane.f32.xlu0 %v352
  %v354 = vpop.xlane.xlu0 %353
  %vm355 = vcmask 7168
  %v356 = vsel %vm355, %v181, %v237
  %v357 = vsel %vm355, %v184, %v240
  %v358 = vsel %vm355, %v187, %v243
  %v359 = vsel %vm355, %v190, %v246
  %v360 = vsel %vm355, %v193, %v249
  %v361 = vsel %vm355, %v196, %v252
  %v362 = vsel %vm355, %v199, %v255
  %v363 = vsel %vm355, %v202, %v258
  %vm364 = vcmask 15360
  %v365 = vsel %vm364, %v356, %v285
  %v366 = vsel %vm364, %v357, %v288
  %v367 = vsel %vm364, %v358, %v291
  %v368 = vsel %vm364, %v359, %v294
  %v369 = vsel %vm364, %v360, %v297
  %v370 = vsel %vm364, %v361, %v300
  %v371 = vsel %vm364, %v362, %v303
  %v372 = vsel %vm364, %v363, %v306
  %vm373 = vcmask 23552
  %v374 = vsel %vm373, %v365, %v333
  %v375 = vsel %vm373, %v366, %v336
  %v376 = vsel %vm373, %v367, %v339
  %v377 = vsel %vm373, %v368, %v342
  %v378 = vsel %vm373, %v369, %v345
  %v379 = vsel %vm373, %v370, %v348
  %v380 = vsel %vm373, %v371, %v351
  %v381 = vsel %vm373, %v372, %v354
  %vm382 = vcmask 31744
  %v383 = vsel %vm382, %v374, -inf
  %384 = vmax.xlane.f32.xlu0 %v383
  %v385 = vpop.xlane.xlu0 %384
  %v386 = vsel %vm382, %v375, -inf
  %387 = vmax.xlane.f32.xlu0 %v386
  %v388 = vpop.xlane.xlu0 %387
  %v389 = vsel %vm382, %v376, -inf
  %390 = vmax.xlane.f32.xlu0 %v389
  %v391 = vpop.xlane.xlu0 %390
  %v392 = vsel %vm382, %v377, -inf
  %393 = vmax.xlane.f32.xlu0 %v392
  %v394 = vpop.xlane.xlu0 %393
  %v395 = vsel %vm382, %v378, -inf
  %396 = vmax.xlane.f32.xlu0 %v395
  %v397 = vpop.xlane.xlu0 %396
  %v398 = vsel %vm382, %v379, -inf
  %399 = vmax.xlane.f32.xlu0 %v398
  %v400 = vpop.xlane.xlu0 %399
  %v401 = vsel %vm382, %v380, -inf
  %402 = vmax.xlane.f32.xlu0 %v401
  %v403 = vpop.xlane.xlu0 %402
  %v404 = vsel %vm382, %v381, -inf
  %405 = vmax.xlane.f32.xlu0 %v404
  %v406 = vpop.xlane.xlu0 %405
  %v407 = vsub.f32 %v374, %v385
  %v408 = vsub.f32 %v375, %v388
  %v409 = vsub.f32 %v376, %v391
  %v410 = vsub.f32 %v377, %v394
  %v411 = vsub.f32 %v378, %v397
  %v412 = vsub.f32 %v379, %v400
  %v413 = vsub.f32 %v380, %v403
  %v414 = vsub.f32 %v381, %v406
  %v415 = vmul.f32 %v407, 1.442695
  %v416 = vpow.pop %v415
  %v417 = vmul.f32 %v408, 1.442695
  %v418 = vpow.pop %v417
  %v419 = vmul.f32 %v409, 1.442695
  %v420 = vpow.pop %v419
  %v421 = vmul.f32 %v410, 1.442695
  %v422 = vpow.pop %v421
  %v423 = vmul.f32 %v411, 1.442695
  %v424 = vpow.pop %v423
  %v425 = vmul.f32 %v412, 1.442695
  %v426 = vpow.pop %v425
  %v427 = vmul.f32 %v413, 1.442695
  %v428 = vpow.pop %v427
  %v429 = vmul.f32 %v414, 1.442695
  %v430 = vpow.pop %v429
  %v431 = vsel %vm382, %v416, 0.0
  %432 = vadd.xlane.f32.xlu0 %v431
  %v433 = vpop.xlane.xlu0 %432
  %v434 = vsel %vm382, %v418, 0.0
  %435 = vadd.xlane.f32.xlu0 %v434
  %v436 = vpop.xlane.xlu0 %435
  %v437 = vsel %vm382, %v420, 0.0
  %438 = vadd.xlane.f32.xlu0 %v437
  %v439 = vpop.xlane.xlu0 %438
  %v440 = vsel %vm382, %v422, 0.0
  %441 = vadd.xlane.f32.xlu0 %v440
  %v442 = vpop.xlane.xlu0 %441
  %v443 = vsel %vm382, %v424, 0.0
  %444 = vadd.xlane.f32.xlu0 %v443
  %v445 = vpop.xlane.xlu0 %444
  %v446 = vsel %vm382, %v426, 0.0
  %447 = vadd.xlane.f32.xlu0 %v446
  %v448 = vpop.xlane.xlu0 %447
  %v449 = vsel %vm382, %v428, 0.0
  %450 = vadd.xlane.f32.xlu0 %v449
  %v451 = vpop.xlane.xlu0 %450
  %v452 = vsel %vm382, %v430, 0.0
  %453 = vadd.xlane.f32.xlu0 %v452
  %v454 = vpop.xlane.xlu0 %453
  %v455 = vrcp.pop %v433
  %v456 = vrcp.pop %v436
  %v457 = vrcp.pop %v439
  %v458 = vrcp.pop %v442
  %v459 = vrcp.pop %v445
  %v460 = vrcp.pop %v448
  %v461 = vrcp.pop %v451
  %v462 = vrcp.pop %v454
  %v463 = vmul.f32 %v416, %v455
  %v464 = vmul.f32 %v418, %v456
  %v465 = vmul.f32 %v420, %v457
  %v466 = vmul.f32 %v422, %v458
  %v467 = vmul.f32 %v424, %v459
  %v468 = vmul.f32 %v426, %v460
  %v469 = vmul.f32 %v428, %v461
  %v470 = vmul.f32 %v430, %v462
  %471 = vst.msk [vmem:[%s5] sm:$0xff] %vm382, %v463
  %472 = vst.msk [vmem:[%s5 + $0x8] sm:$0xff] %vm382, %v464
  %473 = vst.msk [vmem:[%s5 + $0x10] sm:$0xff] %vm382, %v465
  %474 = vst.msk [vmem:[%s5 + $0x18] sm:$0xff] %vm382, %v466
  %475 = vst.msk [vmem:[%s5 + $0x20] sm:$0xff] %vm382, %v467
  %476 = vst.msk [vmem:[%s5 + $0x28] sm:$0xff] %vm382, %v468
  %477 = vst.msk [vmem:[%s5 + $0x30] sm:$0xff] %vm382, %v469
  %478 = vst.msk [vmem:[%s5 + $0x38] sm:$0xff] %vm382, %v470
  %480 = vset.pattern.permute.xlu0 0
  %481 = vperm.xlu0 %480, %v463
  %v482 = vpop.permute.xlu0 %481
  %485 = vset.pattern.permute.xlu0 0
  %486 = vperm.xlu0 %485, %v464
  %v487 = vpop.permute.xlu0 %486
  %490 = vset.pattern.permute.xlu0 0
  %491 = vperm.xlu0 %490, %v465
  %v492 = vpop.permute.xlu0 %491
  %495 = vset.pattern.permute.xlu0 0
  %496 = vperm.xlu0 %495, %v466
  %v497 = vpop.permute.xlu0 %496
  %500 = vset.pattern.permute.xlu0 0
  %501 = vperm.xlu0 %500, %v467
  %v502 = vpop.permute.xlu0 %501
  %505 = vset.pattern.permute.xlu0 0
  %506 = vperm.xlu0 %505, %v468
  %v507 = vpop.permute.xlu0 %506
  %510 = vset.pattern.permute.xlu0 0
  %511 = vperm.xlu0 %510, %v469
  %v512 = vpop.permute.xlu0 %511
  %515 = vset.pattern.permute.xlu0 0
  %516 = vperm.xlu0 %515, %v470
  %v517 = vpop.permute.xlu0 %516
  %v519 = vmul.f32 %v482, %v19
  %v520 = vmul.f32 %v487, %v20
  %v521 = vmul.f32 %v492, %v21
  %v522 = vmul.f32 %v497, %v22
  %v523 = vmul.f32 %v502, %v23
  %v524 = vmul.f32 %v507, %v24
  %v525 = vmul.f32 %v512, %v25
  %v526 = vmul.f32 %v517, %v26
  %527 = vset.pattern.permute.xlu0 1
  %528 = vperm.xlu0 %527, %v463
  %v529 = vpop.permute.xlu0 %528
  %531 = vset.pattern.permute.xlu0 1
  %532 = vperm.xlu0 %531, %v464
  %v533 = vpop.permute.xlu0 %532
  %535 = vset.pattern.permute.xlu0 1
  %536 = vperm.xlu0 %535, %v465
  %v537 = vpop.permute.xlu0 %536
  %539 = vset.pattern.permute.xlu0 1
  %540 = vperm.xlu0 %539, %v466
  %v541 = vpop.permute.xlu0 %540
  %543 = vset.pattern.permute.xlu0 1
  %544 = vperm.xlu0 %543, %v467
  %v545 = vpop.permute.xlu0 %544
  %547 = vset.pattern.permute.xlu0 1
  %548 = vperm.xlu0 %547, %v468
  %v549 = vpop.permute.xlu0 %548
  %551 = vset.pattern.permute.xlu0 1
  %552 = vperm.xlu0 %551, %v469
  %v553 = vpop.permute.xlu0 %552
  %555 = vset.pattern.permute.xlu0 1
  %556 = vperm.xlu0 %555, %v470
  %v557 = vpop.permute.xlu0 %556
  %v559 = vmul.f32 %v529, %v19
  %v560 = vmul.f32 %v533, %v20
  %v561 = vmul.f32 %v537, %v21
  %v562 = vmul.f32 %v541, %v22
  %v563 = vmul.f32 %v545, %v23
  %v564 = vmul.f32 %v549, %v24
  %v565 = vmul.f32 %v553, %v25
  %v566 = vmul.f32 %v557, %v26
  %575 = vrot.lane.b32.xlu0 %v559, 96
  %v576 = vpop.permute.xlu0 %575
  %577 = vrot.lane.b32.xlu0 %v560, 96
  %v578 = vpop.permute.xlu0 %577
  %579 = vrot.lane.b32.xlu0 %v561, 96
  %v580 = vpop.permute.xlu0 %579
  %581 = vrot.lane.b32.xlu0 %v562, 96
  %v582 = vpop.permute.xlu0 %581
  %583 = vrot.lane.b32.xlu0 %v563, 96
  %v584 = vpop.permute.xlu0 %583
  %585 = vrot.lane.b32.xlu0 %v564, 96
  %v586 = vpop.permute.xlu0 %585
  %587 = vrot.lane.b32.xlu0 %v565, 96
  %v588 = vpop.permute.xlu0 %587
  %589 = vrot.lane.b32.xlu0 %v566, 96
  %v590 = vpop.permute.xlu0 %589
  %v599 = vadd.f32 %v519, %v576
  %v600 = vadd.f32 %v520, %v578
  %v601 = vadd.f32 %v521, %v580
  %v602 = vadd.f32 %v522, %v582
  %v603 = vadd.f32 %v523, %v584
  %v604 = vadd.f32 %v524, %v586
  %v605 = vadd.f32 %v525, %v588
  %v606 = vadd.f32 %v526, %v590
  %607 = vset.pattern.permute.xlu0 2
  %608 = vperm.xlu0 %607, %v463
  %v609 = vpop.permute.xlu0 %608
  %611 = vset.pattern.permute.xlu0 2
  %612 = vperm.xlu0 %611, %v464
  %v613 = vpop.permute.xlu0 %612
  %615 = vset.pattern.permute.xlu0 2
  %616 = vperm.xlu0 %615, %v465
  %v617 = vpop.permute.xlu0 %616
  %619 = vset.pattern.permute.xlu0 2
  %620 = vperm.xlu0 %619, %v466
  %v621 = vpop.permute.xlu0 %620
  %623 = vset.pattern.permute.xlu0 2
  %624 = vperm.xlu0 %623, %v467
  %v625 = vpop.permute.xlu0 %624
  %627 = vset.pattern.permute.xlu0 2
  %628 = vperm.xlu0 %627, %v468
  %v629 = vpop.permute.xlu0 %628
  %631 = vset.pattern.permute.xlu0 2
  %632 = vperm.xlu0 %631, %v469
  %v633 = vpop.permute.xlu0 %632
  %635 = vset.pattern.permute.xlu0 2
  %636 = vperm.xlu0 %635, %v470
  %v637 = vpop.permute.xlu0 %636
  %v639 = vmul.f32 %v609, %v19
  %v640 = vmul.f32 %v613, %v20
  %v641 = vmul.f32 %v617, %v21
  %v642 = vmul.f32 %v621, %v22
  %v643 = vmul.f32 %v625, %v23
  %v644 = vmul.f32 %v629, %v24
  %v645 = vmul.f32 %v633, %v25
  %v646 = vmul.f32 %v637, %v26
  %655 = vrot.lane.b32.xlu0 %v639, 64
  %v656 = vpop.permute.xlu0 %655
  %657 = vrot.lane.b32.xlu0 %v640, 64
  %v658 = vpop.permute.xlu0 %657
  %659 = vrot.lane.b32.xlu0 %v641, 64
  %v660 = vpop.permute.xlu0 %659
  %661 = vrot.lane.b32.xlu0 %v642, 64
  %v662 = vpop.permute.xlu0 %661
  %663 = vrot.lane.b32.xlu0 %v643, 64
  %v664 = vpop.permute.xlu0 %663
  %665 = vrot.lane.b32.xlu0 %v644, 64
  %v666 = vpop.permute.xlu0 %665
  %667 = vrot.lane.b32.xlu0 %v645, 64
  %v668 = vpop.permute.xlu0 %667
  %669 = vrot.lane.b32.xlu0 %v646, 64
  %v670 = vpop.permute.xlu0 %669
  %v679 = vadd.f32 %v599, %v656
  %v680 = vadd.f32 %v600, %v658
  %v681 = vadd.f32 %v601, %v660
  %v682 = vadd.f32 %v602, %v662
  %v683 = vadd.f32 %v603, %v664
  %v684 = vadd.f32 %v604, %v666
  %v685 = vadd.f32 %v605, %v668
  %v686 = vadd.f32 %v606, %v670
  %687 = vset.pattern.permute.xlu0 3
  %688 = vperm.xlu0 %687, %v463
  %v689 = vpop.permute.xlu0 %688
  %691 = vset.pattern.permute.xlu0 3
  %692 = vperm.xlu0 %691, %v464
  %v693 = vpop.permute.xlu0 %692
  %695 = vset.pattern.permute.xlu0 3
  %696 = vperm.xlu0 %695, %v465
  %v697 = vpop.permute.xlu0 %696
  %699 = vset.pattern.permute.xlu0 3
  %700 = vperm.xlu0 %699, %v466
  %v701 = vpop.permute.xlu0 %700
  %703 = vset.pattern.permute.xlu0 3
  %704 = vperm.xlu0 %703, %v467
  %v705 = vpop.permute.xlu0 %704
  %707 = vset.pattern.permute.xlu0 3
  %708 = vperm.xlu0 %707, %v468
  %v709 = vpop.permute.xlu0 %708
  %711 = vset.pattern.permute.xlu0 3
  %712 = vperm.xlu0 %711, %v469
  %v713 = vpop.permute.xlu0 %712
  %715 = vset.pattern.permute.xlu0 3
  %716 = vperm.xlu0 %715, %v470
  %v717 = vpop.permute.xlu0 %716
  %v719 = vmul.f32 %v689, %v19
  %v720 = vmul.f32 %v693, %v20
  %v721 = vmul.f32 %v697, %v21
  %v722 = vmul.f32 %v701, %v22
  %v723 = vmul.f32 %v705, %v23
  %v724 = vmul.f32 %v709, %v24
  %v725 = vmul.f32 %v713, %v25
  %v726 = vmul.f32 %v717, %v26
  %735 = vrot.lane.b32.xlu0 %v719, 32
  %v736 = vpop.permute.xlu0 %735
  %737 = vrot.lane.b32.xlu0 %v720, 32
  %v738 = vpop.permute.xlu0 %737
  %739 = vrot.lane.b32.xlu0 %v721, 32
  %v740 = vpop.permute.xlu0 %739
  %741 = vrot.lane.b32.xlu0 %v722, 32
  %v742 = vpop.permute.xlu0 %741
  %743 = vrot.lane.b32.xlu0 %v723, 32
  %v744 = vpop.permute.xlu0 %743
  %745 = vrot.lane.b32.xlu0 %v724, 32
  %v746 = vpop.permute.xlu0 %745
  %747 = vrot.lane.b32.xlu0 %v725, 32
  %v748 = vpop.permute.xlu0 %747
  %749 = vrot.lane.b32.xlu0 %v726, 32
  %v750 = vpop.permute.xlu0 %749
  %v759 = vadd.f32 %v679, %v736
  %v760 = vadd.f32 %v680, %v738
  %v761 = vadd.f32 %v681, %v740
  %v762 = vadd.f32 %v682, %v742
  %v763 = vadd.f32 %v683, %v744
  %v764 = vadd.f32 %v684, %v746
  %v765 = vadd.f32 %v685, %v748
  %v766 = vadd.f32 %v686, %v750
  %vm767 = vcmask 261120
  %768 = vst.msk [vmem:[%s4] sm:$0xff] %vm767, %v759
  %769 = vst.msk [vmem:[%s4 + $0x8] sm:$0xff] %vm767, %v760
  %770 = vst.msk [vmem:[%s4 + $0x10] sm:$0xff] %vm767, %v761
  %771 = vst.msk [vmem:[%s4 + $0x18] sm:$0xff] %vm767, %v762
  %772 = vst.msk [vmem:[%s4 + $0x20] sm:$0xff] %vm767, %v763
  %773 = vst.msk [vmem:[%s4 + $0x28] sm:$0xff] %vm767, %v764
  %774 = vst.msk [vmem:[%s4 + $0x30] sm:$0xff] %vm767, %v765
  %775 = vst.msk [vmem:[%s4 + $0x38] sm:$0xff] %vm767, %v766
  // Predicated region
  $region18: #{tpu_custom_call.1} parent=0 // pred_check
    _
  $region19: #{tpu_custom_call.1} parent=0 // pred_check_branch
    %777 = sbr.rel (0) target = $region21
  $region20: #{tpu_custom_call.1} parent=0 // pred_region
    _
  $region21: #{tpu_custom_call.1} parent=0 // pred_fallthru
    _
  // Predicated region
  $region22: #{tpu_custom_call.1} parent=0 // pred_check
    _
  $region23: #{tpu_custom_call.1} parent=0 // pred_check_branch
    %779 = sbr.rel (0) target = $region25
  $region24: #{tpu_custom_call.1} parent=0 // pred_region
    _
  $region25: #{tpu_custom_call.1} parent=0 // pred_fallthru
    _
  // Predicated region
  $region26: #{tpu_custom_call.1} parent=0 // pred_check
    _
  $region27: #{tpu_custom_call.1} parent=0 // pred_check_branch
    %781 = sbr.rel (0) target = $region29
  $region28: #{tpu_custom_call.1} parent=0 // pred_region
    _
  $region29: #{tpu_custom_call.1} parent=0 // pred_fallthru
    _
  // Predicated region
  $region30: #{tpu_custom_call.1} parent=0 // pred_check
    _
  $region31: #{tpu_custom_call.1} parent=0 // pred_check_branch
    %783 = sbr.rel (0) target = $region33
  $region32: #{tpu_custom_call.1} parent=0 // pred_region
    _
  $region33: #{tpu_custom_call.1} parent=0 // pred_fallthru
    _

</llo_original>
